<compile_context>
chip_gen: v7x
topology: tpu7x:2x2x1
jax: 0.10.0
libtpu: 0.0.40
codegen_flags: <defaults>
</compile_context>

<pallas_src>
import functools

import jax
import jax.numpy as jnp
from jax import lax
from jax.experimental import pallas as pl
from jax.experimental.pallas import tpu as pltpu

LANE = 128


def _round_up(x, m):
    return ((x + m - 1) // m) * m


def _elu(x):
    # ELU alpha=1.0 (PyTorch default). exp(min(x,0)) keeps the unselected
    # branch finite (no inf/NaN if this ever gets differentiated).
    return jnp.where(x > 0, x, jnp.exp(jnp.minimum(x, 0.0)) - 1.0)


def _softplus(x):
    # numerically stable softplus: max(x,0) + log1p(exp(-|x|))
    return jnp.maximum(x, 0.0) + jnp.log1p(jnp.exp(-jnp.abs(x)))


def _sto_encoder_kernel(x_ref, w1_ref, b1_ref, w2_ref, b2_ref, w3_ref, b3_ref,
                        out_ref, *, lat_pad, std_min, std_max):
    # Linear 1 + ELU  (bf16 operands -> f32 accumulate; elementwise in f32)
    h = jnp.dot(x_ref[...], w1_ref[...],
                preferred_element_type=jnp.float32) + b1_ref[...]
    h = _elu(h)

    # Linear 2 + ELU
    h = jnp.dot(h.astype(w2_ref.dtype), w2_ref[...],
                preferred_element_type=jnp.float32) + b2_ref[...]
    h = _elu(h)

    # Linear 3 -> fused (mean | std) slab, lane-dense (2 * lat_pad lanes)
    z = jnp.dot(h.astype(w3_ref.dtype), w3_ref[...],
                preferred_element_type=jnp.float32) + b3_ref[...]

    # torch.chunk(z, 2, -1) done with a lane mask instead of sub-vreg slices.
    col = lax.broadcasted_iota(jnp.int32, z.shape, dimension=1)
    is_mean = col < lat_pad

    # mean = 30 * tanh(mean / 30)
    mean_b = 30.0 * jnp.tanh(z * (1.0 / 30.0))
    # std = std_max - softplus(std_max - std); std = std_min + softplus(std - std_min)
    std_b = std_max - _softplus(std_max - z)
    std_b = std_min + _softplus(std_b - std_min)

    out_ref[...] = jnp.where(is_mean, mean_b, std_b).astype(out_ref.dtype)


def init_params(key, input_shape, hidden_dims, latent_dims):
    """Deterministic f32 parameter init (synthetic; matches nn.Linear layout as (in, out))."""
    k1, k2, k3 = jax.random.split(key, 3)
    s1 = 1.0 / jnp.sqrt(input_shape)
    s2 = 1.0 / jnp.sqrt(hidden_dims)
    w1 = jax.random.normal(k1, (input_shape, hidden_dims), jnp.float32) * s1
    b1 = jnp.zeros((1, hidden_dims), jnp.float32)
    w2 = jax.random.normal(k2, (hidden_dims, hidden_dims), jnp.float32) * s2
    b2 = jnp.zeros((1, hidden_dims), jnp.float32)
    w3 = jax.random.normal(k3, (hidden_dims, 2 * latent_dims), jnp.float32) * s2
    b3 = jnp.zeros((1, 2 * latent_dims), jnp.float32)
    return (w1, b1, w2, b2, w3, b3)


def prepare_params(params, compute_dtype=jnp.bfloat16):
    """One-time: zero-pad feature dims to 128 lanes and cast weights to bf16.

    Layer-3 columns are laid out as [mean(0:L), pad, std(Lp:Lp+L), pad] so the
    kernel can chunk with a simple `lane < Lp` mask.
    """
    w1, b1, w2, b2, w3, b3 = params
    in_dim, hidden = w1.shape
    latent = w3.shape[1] // 2

    in_p = _round_up(in_dim, LANE)
    h_p = _round_up(hidden, LANE)
    l_p = _round_up(latent, LANE)

    w1p = jnp.zeros((in_p, h_p), compute_dtype).at[:in_dim, :hidden].set(
        w1.astype(compute_dtype))
    b1p = jnp.zeros((1, h_p), jnp.float32).at[:, :hidden].set(b1.reshape(1, -1))

    w2p = jnp.zeros((h_p, h_p), compute_dtype).at[:hidden, :hidden].set(
        w2.astype(compute_dtype))
    b2p = jnp.zeros((1, h_p), jnp.float32).at[:, :hidden].set(b2.reshape(1, -1))

    w3p = jnp.zeros((h_p, 2 * l_p), compute_dtype)
    w3p = w3p.at[:hidden, :latent].set(w3[:, :latent].astype(compute_dtype))
    w3p = w3p.at[:hidden, l_p:l_p + latent].set(w3[:, latent:].astype(compute_dtype))
    b3f = b3.reshape(1, -1)
    b3p = jnp.zeros((1, 2 * l_p), jnp.float32)
    b3p = b3p.at[:, :latent].set(b3f[:, :latent])
    b3p = b3p.at[:, l_p:l_p + latent].set(b3f[:, latent:])

    dims = dict(in_dim=in_dim, hidden=hidden, latent=latent,
                in_p=in_p, h_p=h_p, l_p=l_p)
    return (w1p, b1p, w2p, b2p, w3p, b3p), dims


def sto_encoder_forward(x, prepared_params, dims, std_min=0.1, std_max=10.0,
                        batch_tile=None, compute_dtype=jnp.bfloat16):
    """StoEncoder forward. Returns (mean, std) of the Normal.

    (The torch module wraps these in td.Independent(td.Normal(mean, std), 1);
    the distribution object itself has no kernel-level equivalent.)
    """
    w1p, b1p, w2p, b2p, w3p, b3p = prepared_params
    B = x.shape[0]
    in_dim, in_p = dims["in_dim"], dims["in_p"]
    h_p, l_p, latent = dims["h_p"], dims["l_p"], dims["latent"]
    out_lanes = 2 * l_p

    # Large batch tile (multiple of 8), clamped to the padded batch size.
    if batch_tile is None:
        batch_tile = 1024
    bt = min(_round_up(batch_tile, 8), _round_up(B, 8))
    B_pad = _round_up(B, bt)

    # Pad x: batch -> B_pad, features -> 128 lanes; cast to bf16 for the MXU.
    xp = jnp.zeros((B_pad, in_p), compute_dtype).at[:B, :in_dim].set(
        x.astype(compute_dtype))

    grid = (B_pad // bt,)

    kernel = functools.partial(
        _sto_encoder_kernel,
        lat_pad=l_p,
        std_min=float(std_min),
        std_max=float(std_max),
    )

    flops = 2 * B_pad * (in_p * h_p + h_p * h_p + h_p * out_lanes)
    transcendentals = B_pad * (2 * h_p + 3 * out_lanes)
    bytes_accessed = int(
        xp.size * xp.dtype.itemsize
        + sum(int(a.size) * a.dtype.itemsize for a in prepared_params)
        + B_pad * out_lanes * 4)

    out = pl.pallas_call(
        kernel,
        out_shape=jax.ShapeDtypeStruct((B_pad, out_lanes), jnp.float32),
        grid=grid,
        in_specs=[
            pl.BlockSpec((bt, in_p), lambda i: (i, 0)),        # x (tiled on batch)
            pl.BlockSpec((in_p, h_p), lambda i: (0, 0)),       # w1 (fetched once)
            pl.BlockSpec((1, h_p), lambda i: (0, 0)),          # b1
            pl.BlockSpec((h_p, h_p), lambda i: (0, 0)),        # w2
            pl.BlockSpec((1, h_p), lambda i: (0, 0)),          # b2
            pl.BlockSpec((h_p, out_lanes), lambda i: (0, 0)),  # w3
            pl.BlockSpec((1, out_lanes), lambda i: (0, 0)),    # b3
        ],
        out_specs=pl.BlockSpec((bt, out_lanes), lambda i: (i, 0)),
        compiler_params=pltpu.CompilerParams(
            dimension_semantics=("parallel",)),   # shards batch steps on v7x's 2 TCs
        cost_estimate=pl.CostEstimate(
            flops=flops,
            transcendentals=transcendentals,
            bytes_accessed=bytes_accessed),
    )(xp, w1p, b1p, w2p, b2p, w3p, b3p)

    # Undo padding / fused layout: mean lanes [0:latent], std lanes [l_p:l_p+latent].
    mean = out[:B, :latent]
    std = out[:B, l_p:l_p + latent]
    return mean, std


def _reference_forward(x, params, latent_dims, std_min=0.1, std_max=10.0):
    w1, b1, w2, b2, w3, b3 = params
    h = jax.nn.elu(x @ w1 + b1)
    h = jax.nn.elu(h @ w2 + b2)
    z = h @ w3 + b3
    mean, std = z[:, :latent_dims], z[:, latent_dims:]
    mean = 30.0 * jnp.tanh(mean / 30.0)
    std = std_max - jax.nn.softplus(std_max - std)
    std = std_min + jax.nn.softplus(std - std_min)
    return mean, std


if __name__ == "__main__":
    key = jax.random.PRNGKey(0)
    kx, kp = jax.random.split(key)

    B = 8              # batch
    input_shape = 16   # observation dim
    hidden_dims = 32
    latent_dims = 8

    x = jax.random.normal(kx, (B, input_shape), jnp.float32)
    params = init_params(kp, input_shape, hidden_dims, latent_dims)
    prepared, dims = prepare_params(params)

    mean, std = sto_encoder_forward(x, prepared, dims)
    jax.block_until_ready((mean, std))

    # correctness check against a pure-JAX f32 reference (bf16 operands -> loose tol)
    mean_ref, std_ref = _reference_forward(x, params, latent_dims)
    assert mean.shape == (B, latent_dims) and std.shape == (B, latent_dims)
    assert jnp.allclose(mean, mean_ref, atol=5e-2, rtol=5e-2)
    assert jnp.allclose(std, std_ref, atol=5e-2, rtol=5e-2)
    assert bool(jnp.all(std > 0))

    # TODO(synk): td.Independent(td.Normal(mean, std), 1) has no Pallas equivalent;
    # the kernel returns (mean, std) which fully parameterize that distribution.
    print("KERNEL_OK")
</pallas_src>

<mosaic_0001>
module attributes {stable_mosaic.version = 11 : i64} {
  func.func @_sto_encoder_kernel(%arg0: i32, %arg1: memref<8x128xbf16, #tpu.memory_space<vmem>>, %arg2: memref<128x128xbf16, #tpu.memory_space<vmem>>, %arg3: memref<1x128xf32, #tpu.memory_space<vmem>>, %arg4: memref<128x128xbf16, #tpu.memory_space<vmem>>, %arg5: memref<1x128xf32, #tpu.memory_space<vmem>>, %arg6: memref<128x256xbf16, #tpu.memory_space<vmem>>, %arg7: memref<1x256xf32, #tpu.memory_space<vmem>>, %arg8: memref<8x256xf32, #tpu.memory_space<vmem>>) attributes {dimension_semantics = [#tpu.dimension_semantics<parallel>], iteration_bounds = array<i64: 1>, scalar_prefetch = 0 : i64, scratch_operands = 0 : i64, tpu.core_type = #tpu.core_type<tc>, window_params = [{transform_indices = @transform_0, window_bounds = array<i64: 8, 128>}, {pipeline_mode = #tpu.pipeline_mode<synchronous>, transform_indices = @transform_1, window_bounds = array<i64: 128, 128>}, {pipeline_mode = #tpu.pipeline_mode<synchronous>, transform_indices = @transform_2, window_bounds = array<i64: 1, 128>}, {pipeline_mode = #tpu.pipeline_mode<synchronous>, transform_indices = @transform_3, window_bounds = array<i64: 128, 128>}, {pipeline_mode = #tpu.pipeline_mode<synchronous>, transform_indices = @transform_4, window_bounds = array<i64: 1, 128>}, {pipeline_mode = #tpu.pipeline_mode<synchronous>, transform_indices = @transform_5, window_bounds = array<i64: 128, 256>}, {pipeline_mode = #tpu.pipeline_mode<synchronous>, transform_indices = @transform_6, window_bounds = array<i64: 1, 256>}, {transform_indices = @transform_7, window_bounds = array<i64: 8, 256>}]} {
    %c0 = arith.constant 0 : index
    %c0_0 = arith.constant 0 : index
    %0 = vector.load %arg1[%c0, %c0_0] : memref<8x128xbf16, #tpu.memory_space<vmem>>, vector<8x128xbf16>
    %c0_1 = arith.constant 0 : index
    %c0_2 = arith.constant 0 : index
    %1 = vector.load %arg2[%c0_1, %c0_2] : memref<128x128xbf16, #tpu.memory_space<vmem>>, vector<128x128xbf16>
    %cst = arith.constant dense<0.000000e+00> : vector<8x128xf32>
    %2 = tpu.matmul %0, %1, %cst {dimension_numbers = #tpu.dot_dimension_numbers<[1], [0], [0], [1], [0, 0, 1, 1], [], []>} : vector<8x128xbf16>, vector<128x128xbf16>, vector<8x128xf32> -> vector<8x128xf32>
    %c0_3 = arith.constant 0 : index
    %c0_4 = arith.constant 0 : index
    %3 = vector.load %arg3[%c0_3, %c0_4] : memref<1x128xf32, #tpu.memory_space<vmem>>, vector<1x128xf32>
    %4 = vector.broadcast %3 : vector<1x128xf32> to vector<8x128xf32>
    %5 = arith.addf %2, %4 : vector<8x128xf32>
    %cst_5 = arith.constant 0.000000e+00 : f32
    %6 = vector.broadcast %cst_5 : f32 to vector<8x128xf32>
    %7 = arith.cmpf ogt, %5, %6 : vector<8x128xf32>
    %cst_6 = arith.constant 0.000000e+00 : f32
    %8 = vector.broadcast %cst_6 : f32 to vector<8x128xf32>
    %9 = arith.minimumf %5, %8 : vector<8x128xf32>
    %10 = math.exp %9 : vector<8x128xf32>
    %cst_7 = arith.constant 1.000000e+00 : f32
    %11 = vector.broadcast %cst_7 : f32 to vector<8x128xf32>
    %12 = arith.subf %10, %11 : vector<8x128xf32>
    %13 = arith.select %7, %5, %12 : vector<8x128xi1>, vector<8x128xf32>
    %14 = arith.truncf %13 : vector<8x128xf32> to vector<8x128xbf16>
    %c0_8 = arith.constant 0 : index
    %c0_9 = arith.constant 0 : index
    %15 = vector.load %arg4[%c0_8, %c0_9] : memref<128x128xbf16, #tpu.memory_space<vmem>>, vector<128x128xbf16>
    %cst_10 = arith.constant dense<0.000000e+00> : vector<8x128xf32>
    %16 = tpu.matmul %14, %15, %cst_10 {dimension_numbers = #tpu.dot_dimension_numbers<[1], [0], [0], [1], [0, 0, 1, 1], [], []>} : vector<8x128xbf16>, vector<128x128xbf16>, vector<8x128xf32> -> vector<8x128xf32>
    %c0_11 = arith.constant 0 : index
    %c0_12 = arith.constant 0 : index
    %17 = vector.load %arg5[%c0_11, %c0_12] : memref<1x128xf32, #tpu.memory_space<vmem>>, vector<1x128xf32>
    %18 = vector.broadcast %17 : vector<1x128xf32> to vector<8x128xf32>
    %19 = arith.addf %16, %18 : vector<8x128xf32>
    %cst_13 = arith.constant 0.000000e+00 : f32
    %20 = vector.broadcast %cst_13 : f32 to vector<8x128xf32>
    %21 = arith.cmpf ogt, %19, %20 : vector<8x128xf32>
    %cst_14 = arith.constant 0.000000e+00 : f32
    %22 = vector.broadcast %cst_14 : f32 to vector<8x128xf32>
    %23 = arith.minimumf %19, %22 : vector<8x128xf32>
    %24 = math.exp %23 : vector<8x128xf32>
    %cst_15 = arith.constant 1.000000e+00 : f32
    %25 = vector.broadcast %cst_15 : f32 to vector<8x128xf32>
    %26 = arith.subf %24, %25 : vector<8x128xf32>
    %27 = arith.select %21, %19, %26 : vector<8x128xi1>, vector<8x128xf32>
    %28 = arith.truncf %27 : vector<8x128xf32> to vector<8x128xbf16>
    %c0_16 = arith.constant 0 : index
    %c0_17 = arith.constant 0 : index
    %29 = vector.load %arg6[%c0_16, %c0_17] : memref<128x256xbf16, #tpu.memory_space<vmem>>, vector<128x256xbf16>
    %cst_18 = arith.constant dense<0.000000e+00> : vector<8x256xf32>
    %30 = tpu.matmul %28, %29, %cst_18 {dimension_numbers = #tpu.dot_dimension_numbers<[1], [0], [0], [1], [0, 0, 1, 1], [], []>} : vector<8x128xbf16>, vector<128x256xbf16>, vector<8x256xf32> -> vector<8x256xf32>
    %c0_19 = arith.constant 0 : index
    %c0_20 = arith.constant 0 : index
    %31 = vector.load %arg7[%c0_19, %c0_20] : memref<1x256xf32, #tpu.memory_space<vmem>>, vector<1x256xf32>
    %32 = vector.broadcast %31 : vector<1x256xf32> to vector<8x256xf32>
    %33 = arith.addf %30, %32 : vector<8x256xf32>
    %34 = tpu.iota {dimensions = array<i32: 1>} : vector<8x256xi32>
    %c128_i32 = arith.constant 128 : i32
    %35 = vector.broadcast %c128_i32 : i32 to vector<8x256xi32>
    %36 = arith.cmpi slt, %34, %35 : vector<8x256xi32>
    %cst_21 = arith.constant 0.0333333351 : f32
    %37 = vector.broadcast %cst_21 : f32 to vector<8x256xf32>
    %38 = arith.mulf %33, %37 : vector<8x256xf32>
    %39 = math.tanh %38 : vector<8x256xf32>
    %cst_22 = arith.constant 3.000000e+01 : f32
    %40 = vector.broadcast %cst_22 : f32 to vector<8x256xf32>
    %41 = arith.mulf %40, %39 : vector<8x256xf32>
    %cst_23 = arith.constant 1.000000e+01 : f32
    %42 = vector.broadcast %cst_23 : f32 to vector<8x256xf32>
    %43 = arith.subf %42, %33 : vector<8x256xf32>
    %cst_24 = arith.constant 0.000000e+00 : f32
    %44 = vector.broadcast %cst_24 : f32 to vector<8x256xf32>
    %45 = arith.maximumf %43, %44 : vector<8x256xf32>
    %46 = math.absf %43 : vector<8x256xf32>
    %cst_25 = arith.constant 0.000000e+00 : f32
    %47 = vector.broadcast %cst_25 : f32 to vector<8x256xf32>
    %48 = arith.subf %47, %46 : vector<8x256xf32>
    %49 = math.exp %48 : vector<8x256xf32>
    %50 = math.log1p %49 : vector<8x256xf32>
    %51 = arith.addf %45, %50 : vector<8x256xf32>
    %cst_26 = arith.constant 1.000000e+01 : f32
    %52 = vector.broadcast %cst_26 : f32 to vector<8x256xf32>
    %53 = arith.subf %52, %51 : vector<8x256xf32>
    %cst_27 = arith.constant 1.000000e-01 : f32
    %54 = vector.broadcast %cst_27 : f32 to vector<8x256xf32>
    %55 = arith.subf %53, %54 : vector<8x256xf32>
    %cst_28 = arith.constant 0.000000e+00 : f32
    %56 = vector.broadcast %cst_28 : f32 to vector<8x256xf32>
    %57 = arith.maximumf %55, %56 : vector<8x256xf32>
    %58 = math.absf %55 : vector<8x256xf32>
    %cst_29 = arith.constant 0.000000e+00 : f32
    %59 = vector.broadcast %cst_29 : f32 to vector<8x256xf32>
    %60 = arith.subf %59, %58 : vector<8x256xf32>
    %61 = math.exp %60 : vector<8x256xf32>
    %62 = math.log1p %61 : vector<8x256xf32>
    %63 = arith.addf %57, %62 : vector<8x256xf32>
    %cst_30 = arith.constant 1.000000e-01 : f32
    %64 = vector.broadcast %cst_30 : f32 to vector<8x256xf32>
    %65 = arith.addf %64, %63 : vector<8x256xf32>
    %66 = arith.select %36, %41, %65 : vector<8x256xi1>, vector<8x256xf32>
    %c0_31 = arith.constant 0 : index
    %c0_32 = arith.constant 0 : index
    %67 = vector.load %arg8[%c0_31, %c0_32] : memref<8x256xf32, #tpu.memory_space<vmem>>, vector<8x256xf32>
    tpu.vector_store %arg8[%c0_31, %c0_32], %66 {strides = array<i32>} : memref<8x256xf32, #tpu.memory_space<vmem>>, vector<8x256xf32>,
    return
  }
  func.func @transform_0(%arg0: i32) -> (i32, i32) {
    %c0_i32 = arith.constant 0 : i32
    %c0_i32_0 = arith.constant 0 : i32
    return %arg0, %c0_i32 : i32, i32
  }
  func.func @transform_1(%arg0: i32) -> (i32, i32) {
    %c0_i32 = arith.constant 0 : i32
    %c0_i32_0 = arith.constant 0 : i32
    %c0_i32_1 = arith.constant 0 : i32
    return %c0_i32, %c0_i32_0 : i32, i32
  }
  func.func @transform_2(%arg0: i32) -> (i32, i32) {
    %c0_i32 = arith.constant 0 : i32
    %c0_i32_0 = arith.constant 0 : i32
    %c0_i32_1 = arith.constant 0 : i32
    return %c0_i32, %c0_i32_0 : i32, i32
  }
  func.func @transform_3(%arg0: i32) -> (i32, i32) {
    %c0_i32 = arith.constant 0 : i32
    %c0_i32_0 = arith.constant 0 : i32
    %c0_i32_1 = arith.constant 0 : i32
    return %c0_i32, %c0_i32_0 : i32, i32
  }
  func.func @transform_4(%arg0: i32) -> (i32, i32) {
    %c0_i32 = arith.constant 0 : i32
    %c0_i32_0 = arith.constant 0 : i32
    %c0_i32_1 = arith.constant 0 : i32
    return %c0_i32, %c0_i32_0 : i32, i32
  }
  func.func @transform_5(%arg0: i32) -> (i32, i32) {
    %c0_i32 = arith.constant 0 : i32
    %c0_i32_0 = arith.constant 0 : i32
    %c0_i32_1 = arith.constant 0 : i32
    return %c0_i32, %c0_i32_0 : i32, i32
  }
  func.func @transform_6(%arg0: i32) -> (i32, i32) {
    %c0_i32 = arith.constant 0 : i32
    %c0_i32_0 = arith.constant 0 : i32
    %c0_i32_1 = arith.constant 0 : i32
    return %c0_i32, %c0_i32_0 : i32, i32
  }
  func.func @transform_7(%arg0: i32) -> (i32, i32) {
    %c0_i32 = arith.constant 0 : i32
    %c0_i32_0 = arith.constant 0 : i32
    return %arg0, %c0_i32 : i32, i32
  }
}

</mosaic_0001>

<llo_original>
// kernel: tpu_custom_call.1
$region0: #{tpu_custom_call.1}
  #allocation0 [shape = 'u32[]', space=smem, size = 0x4, offset = 0x4, fixed_abs, tag = 'smem constant byte address 0x4 - core index']
  #allocation1 [shape = 'u32[144,128]{1,0:T(1,128)}', space=vmem, size = 0x12000, scoped, tag = 'internal scratch']
  %s0 = inlined_call_operand.hbm [shape: bf16[8,128], index: 0, kind: input, shape index: {}]
  %s1 = inlined_call_operand.hbm [shape: bf16[128,128], index: 1, kind: input, shape index: {}]
  %s2 = inlined_call_operand.vmem [shape: f32[1,128], index: 2, kind: input, shape index: {}]
  %s3 = inlined_call_operand.hbm [shape: bf16[128,128], index: 3, kind: input, shape index: {}]
  %s4 = inlined_call_operand.vmem [shape: f32[1,128], index: 4, kind: input, shape index: {}]
  %s5 = inlined_call_operand.hbm [shape: bf16[128,256], index: 5, kind: input, shape index: {}]
  %s6 = inlined_call_operand.vmem [shape: f32[1,256], index: 6, kind: input, shape index: {}]
  %s7 = inlined_call_operand.hbm [shape: f32[8,256], index: 7, kind: output, shape index: {}]
  %s8 = sld [smem:[#allocation0]]
  $region54: #{tpu_custom_call.1} parent=0
    _
  %s10 = ssub.s32 1, %s8
  %s11 = scalar_select 0, %s10, %s8
  $region1: #{tpu_custom_call.1} parent=0
    #allocation2 [shape = 'u8[2048]{0}', space=vmem, size = 0x800, scoped, tag = 'input window, operand 0, single buffered']
    #allocation3 [shape = 's32[1]{0}', space=sflag, size = 0x4, scoped, tag = 'scoped memory for tpu_custom_call.1']
    #allocation4 [shape = 's32[1]{0}', space=sflag, size = 0x4, scoped, tag = 'scoped memory for tpu_custom_call.1']
    #allocation5 [shape = 'u8[32768]{0}', space=vmem, size = 0x8000, scoped, tag = 'input window, operand 1, single buffered']
    #allocation6 [shape = 's32[1]{0}', space=sflag, size = 0x4, scoped, tag = 'scoped memory for tpu_custom_call.1']
    #allocation7 [shape = 'u8[32768]{0}', space=vmem, size = 0x8000, scoped, tag = 'input window, operand 3, single buffered']
    #allocation8 [shape = 'u8[65536]{0}', space=vmem, size = 0x10000, scoped, tag = 'input window, operand 5, single buffered']
    #allocation9 [shape = 's32[1]{0}', space=sflag, size = 0x4, scoped, tag = 'scoped memory for tpu_custom_call.1']
    #allocation10 [shape = 'u8[8192]{0}', space=vmem, size = 0x2000, scoped, tag = 'output window, operand 0, single buffered']
    %12 = vsyncpa [#allocation3], 0
    %13 = vsyncpa [#allocation6], 0
    %14 = vsyncpa [#allocation9], 0
    %15 = vsyncpa [#allocation4], 0
    // Predicated region
    $region2: #{tpu_custom_call.1} parent=1 // pred_check
      _
    $region3: #{tpu_custom_call.1} parent=1 // pred_check_branch
      %17 = sbr.rel (0) target = $region5
    $region4: #{tpu_custom_call.1} parent=1 // pred_region
      %s19 = ssub.s32 64, 64
      %20 = vsyncadd [#allocation3], %s19
      %s22 = sshll.u32 [#allocation2], 4
      %s23 = int_to_ptr.vmem [resolvable:$true] %s22
      %25 = dma.hbm_to_vmem [thread:$0]  %s0, 64, %s23, [#allocation3]
    $region5: #{tpu_custom_call.1} parent=1 // pred_fallthru
      _
    // Predicated region
    $region6: #{tpu_custom_call.1} parent=1 // pred_check
      _
    $region7: #{tpu_custom_call.1} parent=1 // pred_check_branch
      %27 = sbr.rel (0) target = $region9
    $region8: #{tpu_custom_call.1} parent=1 // pred_region
      %s29 = ssub.s32 1024, 1024
      %30 = vsyncadd [#allocation6], %s29
      %s31 = sshll.u32 [#allocation5], 4
      %s32 = int_to_ptr.vmem [resolvable:$true] %s31
      %37 = dma.hbm_to_vmem [thread:$0]  %s1, 1024, %s32, [#allocation6], 64, 64, 4
    $region9: #{tpu_custom_call.1} parent=1 // pred_fallthru
      _
    // Predicated region
    $region10: #{tpu_custom_call.1} parent=1 // pred_check
      _
    $region11: #{tpu_custom_call.1} parent=1 // pred_check_branch
      %39 = sbr.rel (0) target = $region13
    $region12: #{tpu_custom_call.1} parent=1 // pred_region
      _
    $region13: #{tpu_custom_call.1} parent=1 // pred_fallthru
      _
    // Predicated region
    $region14: #{tpu_custom_call.1} parent=1 // pred_check
      _
    $region15: #{tpu_custom_call.1} parent=1 // pred_check_branch
      %41 = sbr.rel (0) target = $region17
    $region16: #{tpu_custom_call.1} parent=1 // pred_region
      %s43 = ssub.s32 1024, 1024
      %44 = vsyncadd [#allocation6], %s43
      %s45 = sshll.u32 [#allocation7], 4
      %s46 = int_to_ptr.vmem [resolvable:$true] %s45
      %51 = dma.hbm_to_vmem [thread:$0]  %s3, 1024, %s46, [#allocation6], 64, 64, 4
    $region17: #{tpu_custom_call.1} parent=1 // pred_fallthru
      _
    // Predicated region
    $region18: #{tpu_custom_call.1} parent=1 // pred_check
      _
    $region19: #{tpu_custom_call.1} parent=1 // pred_check_branch
      %53 = sbr.rel (0) target = $region21
    $region20: #{tpu_custom_call.1} parent=1 // pred_region
      _
    $region21: #{tpu_custom_call.1} parent=1 // pred_fallthru
      _
    // Predicated region
    $region22: #{tpu_custom_call.1} parent=1 // pred_check
      _
    $region23: #{tpu_custom_call.1} parent=1 // pred_check_branch
      %55 = sbr.rel (0) target = $region25
    $region24: #{tpu_custom_call.1} parent=1 // pred_region
      %s57 = ssub.s32 2048, 2048
      %58 = vsyncadd [#allocation9], %s57
      %s59 = sshll.u32 [#allocation8], 4
      %s60 = int_to_ptr.vmem [resolvable:$true] %s59
      %65 = dma.hbm_to_vmem [thread:$0]  %s5, 2048, %s60, [#allocation9], 128, 128, 8
    $region25: #{tpu_custom_call.1} parent=1 // pred_fallthru
      _
    // Predicated region
    $region26: #{tpu_custom_call.1} parent=1 // pred_check
      _
    $region27: #{tpu_custom_call.1} parent=1 // pred_check_branch
      %67 = sbr.rel (0) target = $region29
    $region28: #{tpu_custom_call.1} parent=1 // pred_region
      _
    $region29: #{tpu_custom_call.1} parent=1 // pred_fallthru
      _
    // Predicated region
    $region30: #{tpu_custom_call.1} parent=1 // pred_check
      _
    $region31: #{tpu_custom_call.1} parent=1 // pred_check_branch
      %69 = sbr.rel (0) target = $region33
    $region32: #{tpu_custom_call.1} parent=1 // pred_region
      %70 = dma.done [#allocation3], 64
    $region33: #{tpu_custom_call.1} parent=1 // pred_fallthru
      _
    // Predicated region
    $region34: #{tpu_custom_call.1} parent=1 // pred_check
      _
    $region35: #{tpu_custom_call.1} parent=1 // pred_check_branch
      %72 = sbr.rel (0) target = $region37
    $region36: #{tpu_custom_call.1} parent=1 // pred_region
      %73 = dma.done [#allocation6], 1024
    $region37: #{tpu_custom_call.1} parent=1 // pred_fallthru
      _
    // Predicated region
    $region38: #{tpu_custom_call.1} parent=1 // pred_check
      _
    $region39: #{tpu_custom_call.1} parent=1 // pred_check_branch
      %75 = sbr.rel (0) target = $region41
    $region40: #{tpu_custom_call.1} parent=1 // pred_region
      %76 = dma.done [#allocation6], 1024
    $region41: #{tpu_custom_call.1} parent=1 // pred_fallthru
      _
    // Predicated region
    $region42: #{tpu_custom_call.1} parent=1 // pred_check
      _
    $region43: #{tpu_custom_call.1} parent=1 // pred_check_branch
      %78 = sbr.rel (0) target = $region45
    $region44: #{tpu_custom_call.1} parent=1 // pred_region
      %79 = dma.done [#allocation9], 2048
    $region45: #{tpu_custom_call.1} parent=1 // pred_fallthru
      _
    %v81 = vld [vmem:[#allocation2] sm:$0xf]
    %v82 = vld [vmem:[#allocation5] sm:$0xf]
    %v83 = vld [vmem:[#allocation5 + $0x4] sm:$0xf]
    %v84 = vld [vmem:[#allocation5 + $0x8] sm:$0xf]
    %v85 = vld [vmem:[#allocation5 + $0xc] sm:$0xf]
    %v86 = vld [vmem:[#allocation5 + $0x10] sm:$0xf]
    %v87 = vld [vmem:[#allocation5 + $0x14] sm:$0xf]
    %v88 = vld [vmem:[#allocation5 + $0x18] sm:$0xf]
    %v89 = vld [vmem:[#allocation5 + $0x1c] sm:$0xf]
    %v90 = vld [vmem:[#allocation5 + $0x20] sm:$0xf]
    %v91 = vld [vmem:[#allocation5 + $0x24] sm:$0xf]
    %v92 = vld [vmem:[#allocation5 + $0x28] sm:$0xf]
    %v93 = vld [vmem:[#allocation5 + $0x2c] sm:$0xf]
    %v94 = vld [vmem:[#allocation5 + $0x30] sm:$0xf]
    %v95 = vld [vmem:[#allocation5 + $0x34] sm:$0xf]
    %v96 = vld [vmem:[#allocation5 + $0x38] sm:$0xf]
    %v97 = vld [vmem:[#allocation5 + $0x3c] sm:$0xf]
    %v98 = vld [vmem:[%s2] sm:$0x1]
    %v100 = vlaneseq
    %v101 = vshrl.u32 %v100, 7
    %v102 = vsub.s32 0, %v101
    %v103 = vrot.slane %v98, %v102
    %v121 = vunpack.c.l.b16 %v82
    %v122 = vunpack.c.l.b16 %v83
    %v123 = vunpack.c.l.b16 %v84
    %v124 = vunpack.c.l.b16 %v85
    %v125 = vunpack.c.l.b16 %v86
    %v126 = vunpack.c.l.b16 %v87
    %v127 = vunpack.c.l.b16 %v88
    %v128 = vunpack.c.l.b16 %v89
    %v129 = vunpack.c.l.b16 %v90
    %v130 = vunpack.c.l.b16 %v91
    %v131 = vunpack.c.l.b16 %v92
    %v132 = vunpack.c.l.b16 %v93
    %v133 = vunpack.c.l.b16 %v94
    %v134 = vunpack.c.l.b16 %v95
    %v135 = vunpack.c.l.b16 %v96
    %v136 = vunpack.c.l.b16 %v97
    %v137 = vpack.c.b16 %v122, %v121
    %v138 = vpack.c.b16 %v124, %v123
    %v139 = vpack.c.b16 %v126, %v125
    %v140 = vpack.c.b16 %v128, %v127
    %v141 = vpack.c.b16 %v130, %v129
    %v142 = vpack.c.b16 %v132, %v131
    %v143 = vpack.c.b16 %v134, %v133
    %v144 = vpack.c.b16 %v136, %v135
    %153 = vmatprep.subr.bf16.mxu0 0
    %154 = vmatpush1.bf16.msra.mxu0 %v137
    %155 = vmatprep.subr.bf16.mxu0 0
    %156 = vmatpush1.bf16.msra.mxu0 %v138
    %157 = vmatprep.subr.bf16.mxu0 0
    %158 = vmatpush1.bf16.msra.mxu0 %v139
    %159 = vmatprep.subr.bf16.mxu0 0
    %160 = vmatpush1.bf16.msra.mxu0 %v140
    %161 = vmatprep.subr.bf16.mxu0 0
    %162 = vmatpush1.bf16.msra.mxu0 %v141
    %163 = vmatprep.subr.bf16.mxu0 0
    %164 = vmatpush1.bf16.msra.mxu0 %v142
    %165 = vmatprep.subr.bf16.mxu0 0
    %166 = vmatpush1.bf16.msra.mxu0 %v143
    %167 = vmatprep.subr.bf16.mxu0 0
    %168 = vmatpush1.bf16.msra.mxu0 %v144
    %169 = vmatprep.subr.bf16.mxu0 0
    %170 = vmatpush1.bf16.msra.mxu0 0
    %171 = vmatprep.subr.bf16.mxu0 0
    %172 = vmatpush1.bf16.msra.mxu0 0
    %173 = vmatprep.subr.bf16.mxu0 0
    %174 = vmatpush1.bf16.msra.mxu0 0
    %175 = vmatprep.subr.bf16.mxu0 0
    %176 = vmatpush1.bf16.msra.mxu0 0
    %177 = vmatprep.subr.bf16.mxu0 0
    %178 = vmatpush1.bf16.msra.mxu0 0
    %179 = vmatprep.subr.bf16.mxu0 0
    %180 = vmatpush1.bf16.msra.mxu0 0
    %181 = vmatprep.subr.bf16.mxu0 0
    %182 = vmatpush1.bf16.msra.mxu0 0
    %183 = vmatprep.subr.bf16.mxu0 0
    %184 = vmatpush1.bf16.msra.mxu0 0
    %185 = vmatprep.mubr.bf16.mxu0 0
    %186 = vmatmul.mubr.bf16.gmra.mrb[0].mxu0 %v81
    %v187 = vpop.f32.mrb[0].mxu0
    %v188 = vadd.f32 %v103, %v187
    %v189 = vpop.f32.mrb[0].mxu0
    %v190 = vpop.f32.mrb[0].mxu0
    %v191 = vpop.f32.mrb[0].mxu0
    %192 = vdwg.mxu0
    %vm193 = vcmp.gt.f32.partialorder %v188, 0.0
    %v194 = vmin.f32 %v188, 0.0
    %v195 = vmul.f32 %v194, 1.442695
    %v196 = vpow.pop %v195
    %v197 = vsub.f32 %v196, 1.0
    %v198 = vsel %vm193, %v188, %v197
    %v199 = vpack.c.bf16 %v198, %v198
    %v200 = vld [vmem:[#allocation7] sm:$0xf]
    %v201 = vld [vmem:[#allocation7 + $0x4] sm:$0xf]
    %v202 = vld [vmem:[#allocation7 + $0x8] sm:$0xf]
    %v203 = vld [vmem:[#allocation7 + $0xc] sm:$0xf]
    %v204 = vld [vmem:[#allocation7 + $0x10] sm:$0xf]
    %v205 = vld [vmem:[#allocation7 + $0x14] sm:$0xf]
    %v206 = vld [vmem:[#allocation7 + $0x18] sm:$0xf]
    %v207 = vld [vmem:[#allocation7 + $0x1c] sm:$0xf]
    %v208 = vld [vmem:[#allocation7 + $0x20] sm:$0xf]
    %v209 = vld [vmem:[#allocation7 + $0x24] sm:$0xf]
    %v210 = vld [vmem:[#allocation7 + $0x28] sm:$0xf]
    %v211 = vld [vmem:[#allocation7 + $0x2c] sm:$0xf]
    %v212 = vld [vmem:[#allocation7 + $0x30] sm:$0xf]
    %v213 = vld [vmem:[#allocation7 + $0x34] sm:$0xf]
    %v214 = vld [vmem:[#allocation7 + $0x38] sm:$0xf]
    %v215 = vld [vmem:[#allocation7 + $0x3c] sm:$0xf]
    %v216 = vld [vmem:[%s4] sm:$0x1]
    %v218 = vlaneseq
    %v219 = vshrl.u32 %v218, 7
    %v220 = vsub.s32 0, %v219
    %v221 = vrot.slane %v216, %v220
    %v239 = vunpack.c.l.b16 %v200
    %v240 = vunpack.c.l.b16 %v201
    %v241 = vunpack.c.l.b16 %v202
    %v242 = vunpack.c.l.b16 %v203
    %v243 = vunpack.c.l.b16 %v204
    %v244 = vunpack.c.l.b16 %v205
    %v245 = vunpack.c.l.b16 %v206
    %v246 = vunpack.c.l.b16 %v207
    %v247 = vunpack.c.l.b16 %v208
    %v248 = vunpack.c.l.b16 %v209
    %v249 = vunpack.c.l.b16 %v210
    %v250 = vunpack.c.l.b16 %v211
    %v251 = vunpack.c.l.b16 %v212
    %v252 = vunpack.c.l.b16 %v213
    %v253 = vunpack.c.l.b16 %v214
    %v254 = vunpack.c.l.b16 %v215
    %v255 = vpack.c.b16 %v240, %v239
    %v256 = vpack.c.b16 %v242, %v241
    %v257 = vpack.c.b16 %v244, %v243
    %v258 = vpack.c.b16 %v246, %v245
    %v259 = vpack.c.b16 %v248, %v247
    %v260 = vpack.c.b16 %v250, %v249
    %v261 = vpack.c.b16 %v252, %v251
    %v262 = vpack.c.b16 %v254, %v253
    %271 = vmatprep.subr.bf16.mxu0 0
    %272 = vmatpush1.bf16.msra.mxu0 %v255
    %273 = vmatprep.subr.bf16.mxu0 0
    %274 = vmatpush1.bf16.msra.mxu0 %v256
    %275 = vmatprep.subr.bf16.mxu0 0
    %276 = vmatpush1.bf16.msra.mxu0 %v257
    %277 = vmatprep.subr.bf16.mxu0 0
    %278 = vmatpush1.bf16.msra.mxu0 %v258
    %279 = vmatprep.subr.bf16.mxu0 0
    %280 = vmatpush1.bf16.msra.mxu0 %v259
    %281 = vmatprep.subr.bf16.mxu0 0
    %282 = vmatpush1.bf16.msra.mxu0 %v260
    %283 = vmatprep.subr.bf16.mxu0 0
    %284 = vmatpush1.bf16.msra.mxu0 %v261
    %285 = vmatprep.subr.bf16.mxu0 0
    %286 = vmatpush1.bf16.msra.mxu0 %v262
    %287 = vmatprep.subr.bf16.mxu0 0
    %288 = vmatpush1.bf16.msra.mxu0 0
    %289 = vmatprep.subr.bf16.mxu0 0
    %290 = vmatpush1.bf16.msra.mxu0 0
    %291 = vmatprep.subr.bf16.mxu0 0
    %292 = vmatpush1.bf16.msra.mxu0 0
    %293 = vmatprep.subr.bf16.mxu0 0
    %294 = vmatpush1.bf16.msra.mxu0 0
    %295 = vmatprep.subr.bf16.mxu0 0
    %296 = vmatpush1.bf16.msra.mxu0 0
    %297 = vmatprep.subr.bf16.mxu0 0
    %298 = vmatpush1.bf16.msra.mxu0 0
    %299 = vmatprep.subr.bf16.mxu0 0
    %300 = vmatpush1.bf16.msra.mxu0 0
    %301 = vmatprep.subr.bf16.mxu0 0
    %302 = vmatpush1.bf16.msra.mxu0 0
    %303 = vmatprep.mubr.bf16.mxu0 0
    %304 = vmatmul.mubr.bf16.gmra.mrb[0].mxu0 %v199
    %v305 = vpop.f32.mrb[0].mxu0
    %v306 = vadd.f32 %v221, %v305
    %v307 = vpop.f32.mrb[0].mxu0
    %v308 = vpop.f32.mrb[0].mxu0
    %v309 = vpop.f32.mrb[0].mxu0
    %310 = vdwg.mxu0
    %vm311 = vcmp.gt.f32.partialorder %v306, 0.0
    %v312 = vmin.f32 %v306, 0.0
    %v313 = vmul.f32 %v312, 1.442695
    %v314 = vpow.pop %v313
    %v315 = vsub.f32 %v314, 1.0
    %v316 = vsel %vm311, %v306, %v315
    %v317 = vpack.c.bf16 %v316, %v316
    %v318 = vld [vmem:[#allocation8] sm:$0xff]
    %v319 = vld [vmem:[#allocation8 + $0x8] sm:$0xff]
    %v320 = vld [vmem:[#allocation8 + $0x10] sm:$0xff]
    %v321 = vld [vmem:[#allocation8 + $0x18] sm:$0xff]
    %v322 = vld [vmem:[#allocation8 + $0x20] sm:$0xff]
    %v323 = vld [vmem:[#allocation8 + $0x28] sm:$0xff]
    %v324 = vld [vmem:[#allocation8 + $0x30] sm:$0xff]
    %v325 = vld [vmem:[#allocation8 + $0x38] sm:$0xff]
    %v326 = vld [vmem:[#allocation8 + $0x40] sm:$0xff]
    %v327 = vld [vmem:[#allocation8 + $0x48] sm:$0xff]
    %v328 = vld [vmem:[#allocation8 + $0x50] sm:$0xff]
    %v329 = vld [vmem:[#allocation8 + $0x58] sm:$0xff]
    %v330 = vld [vmem:[#allocation8 + $0x60] sm:$0xff]
    %v331 = vld [vmem:[#allocation8 + $0x68] sm:$0xff]
    %v332 = vld [vmem:[#allocation8 + $0x70] sm:$0xff]
    %v333 = vld [vmem:[#allocation8 + $0x78] sm:$0xff]
    %v334 = vld [vmem:[%s6] sm:$0x3]
    %v336 = vlaneseq
    %v337 = vshrl.u32 %v336, 7
    %v338 = vsub.s32 0, %v337
    %v339 = vrot.slane %v334, %v338
    %v340 = vlaneseq
    %v341 = vshrl.u32 %v340, 7
    %v342 = vsub.s32 1, %v341
    %v343 = vrot.slane %v334, %v342
    %v362 = vunpack.c.l.b16 %v318
    %v363 = vunpack.c.h.b16 %v318
    %v364 = vunpack.c.l.b16 %v319
    %v365 = vunpack.c.h.b16 %v319
    %v366 = vunpack.c.l.b16 %v320
    %v367 = vunpack.c.h.b16 %v320
    %v368 = vunpack.c.l.b16 %v321
    %v369 = vunpack.c.h.b16 %v321
    %v370 = vunpack.c.l.b16 %v322
    %v371 = vunpack.c.h.b16 %v322
    %v372 = vunpack.c.l.b16 %v323
    %v373 = vunpack.c.h.b16 %v323
    %v374 = vunpack.c.l.b16 %v324
    %v375 = vunpack.c.h.b16 %v324
    %v376 = vunpack.c.l.b16 %v325
    %v377 = vunpack.c.h.b16 %v325
    %v378 = vunpack.c.l.b16 %v326
    %v379 = vunpack.c.h.b16 %v326
    %v380 = vunpack.c.l.b16 %v327
    %v381 = vunpack.c.h.b16 %v327
    %v382 = vunpack.c.l.b16 %v328
    %v383 = vunpack.c.h.b16 %v328
    %v384 = vunpack.c.l.b16 %v329
    %v385 = vunpack.c.h.b16 %v329
    %v386 = vunpack.c.l.b16 %v330
    %v387 = vunpack.c.h.b16 %v330
    %v388 = vunpack.c.l.b16 %v331
    %v389 = vunpack.c.h.b16 %v331
    %v390 = vunpack.c.l.b16 %v332
    %v391 = vunpack.c.h.b16 %v332
    %v392 = vunpack.c.l.b16 %v333
    %v393 = vunpack.c.h.b16 %v333
    %v394 = vpack.c.b16 %v364, %v362
    %v395 = vpack.c.b16 %v365, %v363
    %v396 = vpack.c.b16 %v368, %v366
    %v397 = vpack.c.b16 %v369, %v367
    %v398 = vpack.c.b16 %v372, %v370
    %v399 = vpack.c.b16 %v373, %v371
    %v400 = vpack.c.b16 %v376, %v374
    %v401 = vpack.c.b16 %v377, %v375
    %v402 = vpack.c.b16 %v380, %v378
    %v403 = vpack.c.b16 %v381, %v379
    %v404 = vpack.c.b16 %v384, %v382
    %v405 = vpack.c.b16 %v385, %v383
    %v406 = vpack.c.b16 %v388, %v386
    %v407 = vpack.c.b16 %v389, %v387
    %v408 = vpack.c.b16 %v392, %v390
    %v409 = vpack.c.b16 %v393, %v391
    %426 = vmatprep.subr.bf16.mxu0 %v395
    %427 = vmatpush1.bf16.msra.mxu0 %v394
    %428 = vmatprep.subr.bf16.mxu0 %v397
    %429 = vmatpush1.bf16.msra.mxu0 %v396
    %430 = vmatprep.subr.bf16.mxu0 %v399
    %431 = vmatpush1.bf16.msra.mxu0 %v398
    %432 = vmatprep.subr.bf16.mxu0 %v401
    %433 = vmatpush1.bf16.msra.mxu0 %v400
    %434 = vmatprep.subr.bf16.mxu0 %v403
    %435 = vmatpush1.bf16.msra.mxu0 %v402
    %436 = vmatprep.subr.bf16.mxu0 %v405
    %437 = vmatpush1.bf16.msra.mxu0 %v404
    %438 = vmatprep.subr.bf16.mxu0 %v407
    %439 = vmatpush1.bf16.msra.mxu0 %v406
    %440 = vmatprep.subr.bf16.mxu0 %v409
    %441 = vmatpush1.bf16.msra.mxu0 %v408
    %442 = vmatprep.subr.bf16.mxu0 0
    %443 = vmatpush1.bf16.msra.mxu0 0
    %444 = vmatprep.subr.bf16.mxu0 0
    %445 = vmatpush1.bf16.msra.mxu0 0
    %446 = vmatprep.subr.bf16.mxu0 0
    %447 = vmatpush1.bf16.msra.mxu0 0
    %448 = vmatprep.subr.bf16.mxu0 0
    %449 = vmatpush1.bf16.msra.mxu0 0
    %450 = vmatprep.subr.bf16.mxu0 0
    %451 = vmatpush1.bf16.msra.mxu0 0
    %452 = vmatprep.subr.bf16.mxu0 0
    %453 = vmatpush1.bf16.msra.mxu0 0
    %454 = vmatprep.subr.bf16.mxu0 0
    %455 = vmatpush1.bf16.msra.mxu0 0
    %456 = vmatprep.subr.bf16.mxu0 0
    %457 = vmatpush1.bf16.msra.mxu0 0
    %458 = vmatprep.mubr.bf16.mxu0 0
    %459 = vmatmul.mubr.bf16.gmra.mrb[0].mxu0 %v317
    %v460 = vpop.f32.mrb[0].mxu0
    %v461 = vadd.f32 %v339, %v460
    %v462 = vpop.f32.mrb[0].mxu0
    %v463 = vadd.f32 %v343, %v462
    %v464 = vpop.f32.mrb[0].mxu0
    %v465 = vpop.f32.mrb[0].mxu0
    %466 = vdwg.mxu0
    %v467 = vlaneseq
    %v468 = vand.u32 %v467, 127
    %v469 = vadd.s32 %v468, 128
    %vm470 = vcmp.lt.s32.totalorder %v468, 128
    %vm471 = vcmp.lt.s32.totalorder %v469, 128
    %v472 = vmul.f32 %v461, 0.033333335
    %v473 = vmul.f32 %v463, 0.033333335
    %v474 = vtanh.pop %v472
    %v475 = vtanh.pop %v473
    %v476 = vmul.f32 %v474, 30.0
    %v477 = vmul.f32 %v475, 30.0
    %v478 = vsub.f32 10.0, %v461
    %v479 = vsub.f32 10.0, %v463
    %v480 = vmax.f32 %v478, 0.0
    %v481 = vmax.f32 %v479, 0.0
    %v482 = vand.u32 2147483647, %v478
    %v483 = vand.u32 2147483647, %v479
    %v484 = vsub.f32 0.0, %v482
    %v485 = vsub.f32 0.0, %v483
    %v486 = vmul.f32 %v484, 1.442695
    %v487 = vpow.pop %v486
    %v488 = vmul.f32 %v485, 1.442695
    %v489 = vpow.pop %v488
    %v490 = vadd.f32 %v487, 1.0
    %v491 = vlog2.pop %v490
    %v492 = vmul.f32 %v491, 0.6931472
    %v493 = vmul.f32 -0.5, %v487
    %v494 = vadd.f32 %v493, 1.0
    %v495 = vmul.f32 %v494, %v487
    %v496 = vand.u32 2147483647, %v487
    %vm497 = vcmp.lt.f32.partialorder %v496, 0.0004427343
    %v498 = vsel %vm497, %v495, %v492
    %v499 = vadd.f32 %v489, 1.0
    %v500 = vlog2.pop %v499
    %v501 = vmul.f32 %v500, 0.6931472
    %v502 = vmul.f32 -0.5, %v489
    %v503 = vadd.f32 %v502, 1.0
    %v504 = vmul.f32 %v503, %v489
    %v505 = vand.u32 2147483647, %v489
    %vm506 = vcmp.lt.f32.partialorder %v505, 0.0004427343
    %v507 = vsel %vm506, %v504, %v501
    %v508 = vadd.f32 %v480, %v498
    %v509 = vadd.f32 %v481, %v507
    %v510 = vsub.f32 10.0, %v508
    %v511 = vsub.f32 10.0, %v509
    %v512 = vsub.f32 %v510, 0.1
    %v513 = vsub.f32 %v511, 0.1
    %v514 = vmax.f32 %v512, 0.0
    %v515 = vmax.f32 %v513, 0.0
    %v516 = vand.u32 2147483647, %v512
    %v517 = vand.u32 2147483647, %v513
    %v518 = vsub.f32 0.0, %v516
    %v519 = vsub.f32 0.0, %v517
    %v520 = vmul.f32 %v518, 1.442695
    %v521 = vpow.pop %v520
    %v522 = vmul.f32 %v519, 1.442695
    %v523 = vpow.pop %v522
    %v524 = vadd.f32 %v521, 1.0
    %v525 = vlog2.pop %v524
    %v526 = vmul.f32 %v525, 0.6931472
    %v527 = vmul.f32 -0.5, %v521
    %v528 = vadd.f32 %v527, 1.0
    %v529 = vmul.f32 %v528, %v521
    %v530 = vand.u32 2147483647, %v521
    %vm531 = vcmp.lt.f32.partialorder %v530, 0.0004427343
    %v532 = vsel %vm531, %v529, %v526
    %v533 = vadd.f32 %v523, 1.0
    %v534 = vlog2.pop %v533
    %v535 = vmul.f32 %v534, 0.6931472
    %v536 = vmul.f32 -0.5, %v523
    %v537 = vadd.f32 %v536, 1.0
    %v538 = vmul.f32 %v537, %v523
    %v539 = vand.u32 2147483647, %v523
    %vm540 = vcmp.lt.f32.partialorder %v539, 0.0004427343
    %v541 = vsel %vm540, %v538, %v535
    %v542 = vadd.f32 %v514, %v532
    %v543 = vadd.f32 %v515, %v541
    %v544 = vadd.f32 %v542, 0.1
    %v545 = vadd.f32 %v543, 0.1
    %v546 = vsel %vm470, %v476, %v544
    %v547 = vsel %vm471, %v477, %v545
    %548 = vst [vmem:[#allocation10] sm:$0xff] %v546
    %549 = vst [vmem:[#allocation10 + $0x8] sm:$0xff] %v547
    // Predicated region
    $region46: #{tpu_custom_call.1} parent=1 // pred_check
      _
    $region47: #{tpu_custom_call.1} parent=1 // pred_check_branch
      %551 = sbr.rel (0) target = $region49
    $region48: #{tpu_custom_call.1} parent=1 // pred_region
      %s553 = ssub.s32 256, 256
      %554 = vsyncadd [#allocation4], %s553
      %s556 = sshll.u32 [#allocation10], 4
      %s557 = int_to_ptr.vmem [resolvable:$true] %s556
      %559 = dma.vmem_to_hbm [thread:$0]  %s557, 256, %s7, [#allocation4]
    $region49: #{tpu_custom_call.1} parent=1 // pred_fallthru
      _
    // Predicated region
    $region50: #{tpu_custom_call.1} parent=1 // pred_check
      _
    $region51: #{tpu_custom_call.1} parent=1 // pred_check_branch
      %561 = sbr.rel (0) target = $region53
    $region52: #{tpu_custom_call.1} parent=1 // pred_region
      %562 = dma.done [#allocation4], 256
    $region53: #{tpu_custom_call.1} parent=1 // pred_fallthru
      _
    %563 = vsyncpa [#allocation3], 1
    %564 = vsyncpa [#allocation6], 1
    %565 = vsyncpa [#allocation9], 1
    %566 = vsyncpa [#allocation4], 1

</llo_original>
